<compile_context>
chip_gen: v7x
topology: tpu7x:2x2x1
jax: 0.10.0
libtpu: 0.0.40
codegen_flags: <defaults>
</compile_context>

<pallas_src>
import functools

import numpy as np
import jax
import jax.numpy as jnp
from jax.experimental import pallas as pl
from jax.experimental.pallas import tpu as pltpu


def _my_layernorm_kernel(inv_rvm_ref, rescale_ref, quad_ref,   # scalar-prefetch (SMEM)
                         x_ref, gain_ref, bias_ref,            # VMEM blocks
                         o_ref, *,
                         eps, ln_x_scaler, mask, true_k):
    g = pl.program_id(0)

    # Pass 1: raw per-(sample, group) moments over the (TB, 1, kr, LANE) tile, pre ln_x_scaler.
    # Divisor is the TRUE K (zero padding leaves the sums unchanged).
    x = x_ref[...].astype(jnp.float32)                        # (TB, 1, kr, LANE)
    inv_k = 1.0 / float(true_k)
    mean = jnp.sum(x, axis=(2, 3), keepdims=True) * inv_k     # (TB, 1, 1, 1)
    mean_x2 = jnp.sum(x * x, axis=(2, 3), keepdims=True) * inv_k
    var = mean_x2 - mean * mean                                # no clamp: matches reference

    # Fold ln_x_scaler analytically: var(s*x) = s^2 * var(x); (s*x - s*mean) = s*(x - mean).
    if ln_x_scaler != 1.0:
        var = var * (ln_x_scaler * ln_x_scaler)

    inv_rvm = inv_rvm_ref[g]      # var_norm_scaler / running_var_mean[g]
    rescale = rescale_ref[g]      # sqrt(var_norm_scaler / running_var_mean[g]) == 1/var_rescale
    qa = quad_ref[0]
    qb = quad_ref[1]
    qc = quad_ref[2]

    var_normed = var * inv_rvm
    cheb = qa * (var_normed - qb) ** 2 + qc

    # mask is a compile-time float -> specialize and drop dead terms.
    if mask == 0.0:
        scale = cheb * rescale
    elif mask == 1.0:
        scale = jax.lax.rsqrt(var + eps)
    else:
        scale = cheb * rescale * (1.0 - mask) + jax.lax.rsqrt(var + eps) * mask
    if ln_x_scaler != 1.0:
        scale = scale * ln_x_scaler

    # Pass 2: re-read x from VMEM (vld slots have slack at HBM-bound operation) instead of
    # holding the f32 tile live across the reduction -> avoids vreg spills for large blocks.
    xv = x_ref[...].astype(jnp.float32)
    x_norm = (xv - mean) * scale
    gain = gain_ref[...].astype(jnp.float32)[None]             # (1, 1, kr, LANE)
    bias = bias_ref[...].astype(jnp.float32)[None]
    o_ref[...] = (gain * x_norm + bias).astype(o_ref.dtype)


def _choose_tb(B, row_bytes, target_bytes=1 << 20):
    """Largest divisor of B whose block stays near ~1 MiB (f32) per x block."""
    tb = max(1, min(B, int(target_bytes // max(1, row_bytes))))
    while B % tb != 0:
        tb -= 1
    return tb


def my_layernorm_forward(x, gain, bias, running_var_mean, quad_finetune_param, *,
                         ln_group_size=64, eps=1e-5, ln_x_scaler=1.0,
                         var_norm_scaler=1.0,
                         ln_quad_coeffs=(0.03, 10.0, 0.2),
                         ln_quad_finetune_factors=(1e-4, 0.1, 1e-3),
                         mask=0.0):
    B, C, H, W = x.shape
    assert C % ln_group_size == 0, "channels must be divisible by ln_group_size"
    G = C // ln_group_size
    K = ln_group_size * H * W

    # Padded lane-dense layout: always 128-wide lanes; pad K to a multiple of 128 with zeros.
    LANE = 128
    K_pad = ((K + LANE - 1) // LANE) * LANE
    kr = K_pad // LANE

    # Layout-only reshapes (+ zero pad if needed); keep the native dtype (no extra HBM upcast).
    xg = x.reshape(B, G, K)
    gain2 = gain.reshape(G, K)
    bias2 = bias.reshape(G, K)
    if K_pad != K:
        pad = K_pad - K
        xg = jnp.pad(xg, ((0, 0), (0, 0), (0, pad)))
        gain2 = jnp.pad(gain2, ((0, 0), (0, pad)))     # zero gain/bias in padded lanes
        bias2 = jnp.pad(bias2, ((0, 0), (0, pad)))
    x4 = xg.reshape(B, G, kr, LANE)
    gain4 = gain2.reshape(G, kr, LANE)
    bias4 = bias2.reshape(G, kr, LANE)

    # Batch TB samples per grid step (~1 MiB of f32 per x block), TB | B.
    row_f32_bytes = K_pad * 4
    TB = _choose_tb(B, row_f32_bytes)
    grid = (G, B // TB)

    # Tiny per-group / quad constants, prefetched to SMEM (traceable under jit; no host bake).
    rvm = running_var_mean.reshape(G).astype(jnp.float32)
    inv_rvm = jnp.float32(var_norm_scaler) / rvm
    rescale = jnp.sqrt(inv_rvm)   # == 1 / sqrt(running_var_mean / var_norm_scaler)
    quad = (jnp.asarray(ln_quad_coeffs, jnp.float32)
            + jnp.asarray(quad_finetune_param, jnp.float32)
              * jnp.asarray(ln_quad_finetune_factors, jnp.float32))

    kernel = functools.partial(
        _my_layernorm_kernel,
        eps=float(eps), ln_x_scaler=float(ln_x_scaler), mask=float(mask), true_k=K)

    out = pl.pallas_call(
        kernel,
        out_shape=jax.ShapeDtypeStruct((B, G, kr, LANE), x.dtype),
        grid_spec=pltpu.PrefetchScalarGridSpec(
            num_scalar_prefetch=3,
            grid=grid,   # b innermost: gain/bias block index constant -> stays VMEM-resident
            in_specs=[
                pl.BlockSpec((TB, 1, kr, LANE),
                             lambda g, b, inv, res, q: (b, g, 0, 0)),   # x
                pl.BlockSpec((1, kr, LANE),
                             lambda g, b, inv, res, q: (g, 0, 0)),      # gain (resident over b)
                pl.BlockSpec((1, kr, LANE),
                             lambda g, b, inv, res, q: (g, 0, 0)),      # bias (resident over b)
            ],
            out_specs=pl.BlockSpec((TB, 1, kr, LANE),
                                   lambda g, b, inv, res, q: (b, g, 0, 0)),
        ),
        compiler_params=pltpu.CompilerParams(
            dimension_semantics=("parallel", "parallel"),
            vmem_limit_bytes=32 * 1024 * 1024),   # safe on v5e/v6e/v7x; blocks budgeted well below
    )(inv_rvm, rescale, quad, x4, gain4, bias4)

    out = out.reshape(B, G, K_pad)
    if K_pad != K:
        out = out[:, :, :K]
    return out.reshape(B, C, H, W)


def my_layernorm_ref(x, gain, bias, running_var_mean, quad_finetune_param, *,
                     ln_group_size=64, eps=1e-5, ln_x_scaler=1.0,
                     var_norm_scaler=1.0,
                     ln_quad_coeffs=(0.03, 10.0, 0.2),
                     ln_quad_finetune_factors=(1e-4, 0.1, 1e-3),
                     mask=0.0):
    """Plain-JAX port of the PyTorch eval-mode forward (for correctness checking)."""
    B, C, H, W = x.shape
    G = C // ln_group_size
    x = x.astype(jnp.float32) * ln_x_scaler
    xg = x.reshape(B, G, ln_group_size, H, W)
    mean = xg.mean(axis=(-1, -2, -3))                    # (B, G)
    mean_x2 = (xg ** 2).mean(axis=(-1, -2, -3))          # (B, G)
    var = mean_x2 - mean ** 2                            # (B, G)
    mean_f = jnp.repeat(mean, ln_group_size, axis=1)[:, :, None, None]
    var_f = jnp.repeat(var, ln_group_size, axis=1)[:, :, None, None]
    rvm_f = jnp.repeat(running_var_mean.astype(jnp.float32),
                       ln_group_size)[None, :, None, None]
    var_normed = var_norm_scaler * var_f / rvm_f
    var_rescale = jnp.sqrt(rvm_f / var_norm_scaler)
    qa = ln_quad_coeffs[0] + quad_finetune_param[0] * ln_quad_finetune_factors[0]
    qb = ln_quad_coeffs[1] + quad_finetune_param[1] * ln_quad_finetune_factors[1]
    qc = ln_quad_coeffs[2] + quad_finetune_param[2] * ln_quad_finetune_factors[2]
    cheb = qa * (var_normed - qb) ** 2 + qc
    x_norm = (x - mean_f) * (cheb / var_rescale * (1.0 - mask)
                             + 1.0 / jnp.sqrt(var_f + eps) * mask)
    return gain[None].astype(jnp.float32) * x_norm + bias[None].astype(jnp.float32)


def _run_case(B, C, H, W, ln_group_size, seed=0):
    G = C // ln_group_size
    key = jax.random.PRNGKey(seed)
    k1, k2, k3, k4 = jax.random.split(key, 4)
    x = 2.0 * jax.random.normal(k1, (B, C, H, W), jnp.float32) + 0.5
    # Parameters per module __init__ shapes (gain=(C,H,W), bias=(C,H,W),
    # running_var_mean=(group_num,), quad_finetune_param=(3,)), deterministic init.
    gain = 1.0 + 0.1 * jax.random.normal(k2, (C, H, W), jnp.float32)
    bias = 0.1 * jax.random.normal(k3, (C, H, W), jnp.float32)
    running_var_mean = 1.0 + 0.25 * jax.random.uniform(k4, (G,), jnp.float32)
    quad_finetune_param = jnp.zeros(3, jnp.float32)   # nn.Parameter(torch.zeros(3))

    out = my_layernorm_forward(x, gain, bias, running_var_mean, quad_finetune_param,
                               ln_group_size=ln_group_size)
    out = jax.block_until_ready(out)

    ref = my_layernorm_ref(x, gain, bias, running_var_mean, quad_finetune_param,
                           ln_group_size=ln_group_size)
    np.testing.assert_allclose(np.asarray(out), np.asarray(ref), rtol=5e-5, atol=5e-5)


if __name__ == "__main__":
    # K = 64*8*8 = 4096  (multiple of 128 -> no padding)
    _run_case(B=2, C=128, H=8, W=8, ln_group_size=64, seed=0)
    # K = 64*7*7 = 3136  (NOT a multiple of 128 -> exercises the zero-padded lane-dense path)
    _run_case(B=2, C=128, H=7, W=7, ln_group_size=64, seed=1)
    print("KERNEL_OK")
</pallas_src>

<mosaic_0001>
module attributes {stable_mosaic.version = 11 : i64} {
  func.func @_my_layernorm_kernel(%arg0: i32, %arg1: i32, %arg2: memref<2xf32, #tpu.memory_space<smem>>, %arg3: memref<2xf32, #tpu.memory_space<smem>>, %arg4: memref<3xf32, #tpu.memory_space<smem>>, %arg5: memref<2x1x32x128xf32, #tpu.memory_space<vmem>>, %arg6: memref<1x32x128xf32, #tpu.memory_space<vmem>>, %arg7: memref<1x32x128xf32, #tpu.memory_space<vmem>>, %arg8: memref<2x1x32x128xf32, #tpu.memory_space<vmem>>) attributes {dimension_semantics = [#tpu.dimension_semantics<parallel>, #tpu.dimension_semantics<parallel>], iteration_bounds = array<i64: 2, 1>, scalar_prefetch = 3 : i64, scratch_operands = 0 : i64, tpu.core_type = #tpu.core_type<tc>, window_params = [{transform_indices = @transform_0, window_bounds = array<i64: 2, 1, 32, 128>}, {transform_indices = @transform_1, window_bounds = array<i64: 1, 32, 128>}, {transform_indices = @transform_2, window_bounds = array<i64: 1, 32, 128>}, {transform_indices = @transform_3, window_bounds = array<i64: 2, 1, 32, 128>}]} {
    %c0 = arith.constant 0 : index
    %c0_0 = arith.constant 0 : index
    %c0_1 = arith.constant 0 : index
    %c0_2 = arith.constant 0 : index
    %0 = vector.load %arg5[%c0, %c0_0, %c0_1, %c0_2] : memref<2x1x32x128xf32, #tpu.memory_space<vmem>>, vector<2x1x32x128xf32>
    %cst = arith.constant dense<0.000000e+00> : vector<2x1xf32>
    %1 = vector.multi_reduction <add>, %0, %cst [2, 3] : vector<2x1x32x128xf32> to vector<2x1xf32>
    %2 = vector.shape_cast %1 : vector<2x1xf32> to vector<2x1x1x1xf32>
    %cst_3 = arith.constant 2.44140625E-4 : f32
    %3 = vector.broadcast %cst_3 : f32 to vector<2x1x1x1xf32>
    %4 = arith.mulf %2, %3 : vector<2x1x1x1xf32>
    %5 = arith.mulf %0, %0 : vector<2x1x32x128xf32>
    %cst_4 = arith.constant dense<0.000000e+00> : vector<2x1xf32>
    %6 = vector.multi_reduction <add>, %5, %cst_4 [2, 3] : vector<2x1x32x128xf32> to vector<2x1xf32>
    %7 = vector.shape_cast %6 : vector<2x1xf32> to vector<2x1x1x1xf32>
    %cst_5 = arith.constant 2.44140625E-4 : f32
    %8 = vector.broadcast %cst_5 : f32 to vector<2x1x1x1xf32>
    %9 = arith.mulf %7, %8 : vector<2x1x1x1xf32>
    %10 = arith.mulf %4, %4 : vector<2x1x1x1xf32>
    %11 = arith.subf %9, %10 : vector<2x1x1x1xf32>
    %12 = arith.index_cast %arg0 : i32 to index
    %13 = memref.load %arg2[%12] : memref<2xf32, #tpu.memory_space<smem>>
    %14 = arith.index_cast %arg0 : i32 to index
    %15 = memref.load %arg3[%14] : memref<2xf32, #tpu.memory_space<smem>>
    %c0_6 = arith.constant 0 : index
    %16 = memref.load %arg4[%c0_6] : memref<3xf32, #tpu.memory_space<smem>>
    %c1 = arith.constant 1 : index
    %17 = memref.load %arg4[%c1] : memref<3xf32, #tpu.memory_space<smem>>
    %c2 = arith.constant 2 : index
    %18 = memref.load %arg4[%c2] : memref<3xf32, #tpu.memory_space<smem>>
    %19 = vector.broadcast %13 : f32 to vector<2x1x1x1xf32>
    %20 = arith.mulf %11, %19 : vector<2x1x1x1xf32>
    %21 = vector.broadcast %17 : f32 to vector<2x1x1x1xf32>
    %22 = arith.subf %20, %21 : vector<2x1x1x1xf32>
    %23 = arith.mulf %22, %22 : vector<2x1x1x1xf32>
    %24 = vector.broadcast %16 : f32 to vector<2x1x1x1xf32>
    %25 = arith.mulf %24, %23 : vector<2x1x1x1xf32>
    %26 = vector.broadcast %18 : f32 to vector<2x1x1x1xf32>
    %27 = arith.addf %25, %26 : vector<2x1x1x1xf32>
    %28 = vector.broadcast %15 : f32 to vector<2x1x1x1xf32>
    %29 = arith.mulf %27, %28 : vector<2x1x1x1xf32>
    %c0_7 = arith.constant 0 : index
    %c0_8 = arith.constant 0 : index
    %c0_9 = arith.constant 0 : index
    %c0_10 = arith.constant 0 : index
    %30 = vector.load %arg5[%c0_7, %c0_8, %c0_9, %c0_10] : memref<2x1x32x128xf32, #tpu.memory_space<vmem>>, vector<2x1x32x128xf32>
    %31 = vector.broadcast %4 : vector<2x1x1x1xf32> to vector<2x1x32x128xf32>
    %32 = arith.subf %30, %31 : vector<2x1x32x128xf32>
    %33 = vector.broadcast %29 : vector<2x1x1x1xf32> to vector<2x1x32x128xf32>
    %34 = arith.mulf %32, %33 : vector<2x1x32x128xf32>
    %c0_11 = arith.constant 0 : index
    %c0_12 = arith.constant 0 : index
    %c0_13 = arith.constant 0 : index
    %35 = vector.load %arg6[%c0_11, %c0_12, %c0_13] : memref<1x32x128xf32, #tpu.memory_space<vmem>>, vector<1x32x128xf32>
    %36 = vector.shape_cast %35 : vector<1x32x128xf32> to vector<1x1x32x128xf32>
    %c0_14 = arith.constant 0 : index
    %c0_15 = arith.constant 0 : index
    %c0_16 = arith.constant 0 : index
    %37 = vector.load %arg7[%c0_14, %c0_15, %c0_16] : memref<1x32x128xf32, #tpu.memory_space<vmem>>, vector<1x32x128xf32>
    %38 = vector.shape_cast %37 : vector<1x32x128xf32> to vector<1x1x32x128xf32>
    %39 = vector.broadcast %36 : vector<1x1x32x128xf32> to vector<2x1x32x128xf32>
    %40 = arith.mulf %39, %34 : vector<2x1x32x128xf32>
    %41 = vector.broadcast %38 : vector<1x1x32x128xf32> to vector<2x1x32x128xf32>
    %42 = arith.addf %40, %41 : vector<2x1x32x128xf32>
    %c0_17 = arith.constant 0 : index
    %c0_18 = arith.constant 0 : index
    %c0_19 = arith.constant 0 : index
    %c0_20 = arith.constant 0 : index
    %43 = vector.load %arg8[%c0_17, %c0_18, %c0_19, %c0_20] : memref<2x1x32x128xf32, #tpu.memory_space<vmem>>, vector<2x1x32x128xf32>
    tpu.vector_store %arg8[%c0_17, %c0_18, %c0_19, %c0_20], %42 {strides = array<i32>} : memref<2x1x32x128xf32, #tpu.memory_space<vmem>>, vector<2x1x32x128xf32>,
    return
  }
  func.func @transform_0(%arg0: i32, %arg1: i32, %arg2: memref<2xf32, #tpu.memory_space<smem>>, %arg3: memref<2xf32, #tpu.memory_space<smem>>, %arg4: memref<3xf32, #tpu.memory_space<smem>>) -> (i32, i32, i32, i32) {
    %c0_i32 = arith.constant 0 : i32
    %c0_i32_0 = arith.constant 0 : i32
    %c0_i32_1 = arith.constant 0 : i32
    return %arg1, %arg0, %c0_i32, %c0_i32_0 : i32, i32, i32, i32
  }
  func.func @transform_1(%arg0: i32, %arg1: i32, %arg2: memref<2xf32, #tpu.memory_space<smem>>, %arg3: memref<2xf32, #tpu.memory_space<smem>>, %arg4: memref<3xf32, #tpu.memory_space<smem>>) -> (i32, i32, i32) {
    %c0_i32 = arith.constant 0 : i32
    %c0_i32_0 = arith.constant 0 : i32
    %c0_i32_1 = arith.constant 0 : i32
    return %arg0, %c0_i32, %c0_i32_0 : i32, i32, i32
  }
  func.func @transform_2(%arg0: i32, %arg1: i32, %arg2: memref<2xf32, #tpu.memory_space<smem>>, %arg3: memref<2xf32, #tpu.memory_space<smem>>, %arg4: memref<3xf32, #tpu.memory_space<smem>>) -> (i32, i32, i32) {
    %c0_i32 = arith.constant 0 : i32
    %c0_i32_0 = arith.constant 0 : i32
    %c0_i32_1 = arith.constant 0 : i32
    return %arg0, %c0_i32, %c0_i32_0 : i32, i32, i32
  }
  func.func @transform_3(%arg0: i32, %arg1: i32, %arg2: memref<2xf32, #tpu.memory_space<smem>>, %arg3: memref<2xf32, #tpu.memory_space<smem>>, %arg4: memref<3xf32, #tpu.memory_space<smem>>) -> (i32, i32, i32, i32) {
    %c0_i32 = arith.constant 0 : i32
    %c0_i32_0 = arith.constant 0 : i32
    %c0_i32_1 = arith.constant 0 : i32
    return %arg1, %arg0, %c0_i32, %c0_i32_0 : i32, i32, i32, i32
  }
}

</mosaic_0001>

<llo_original>
// kernel: tpu_custom_call.1
$region0: #{tpu_custom_call.1}
  #allocation0 [shape = 'u32[]', space=smem, size = 0x4, offset = 0x4, fixed_abs, tag = 'smem constant byte address 0x4 - core index']
  #allocation1 [shape = 'u32[144,128]{1,0:T(1,128)}', space=vmem, size = 0x12000, scoped, tag = 'internal scratch']
  #allocation2 [shape = 's32[1]{0}', space=sflag, size = 0x4, scoped, tag = 'scoped memory for tpu_custom_call.1']
  #allocation3 [shape = 'u8[512]{0}', space=smem, size = 0x200, scoped, tag = 'prefetched SMEM operand 0']
  #allocation4 [shape = 'u8[512]{0}', space=smem, size = 0x200, scoped, tag = 'prefetched SMEM operand 1']
  #allocation5 [shape = 'u8[512]{0}', space=smem, size = 0x200, scoped, tag = 'prefetched SMEM operand 2']
  #allocation13 [shape = 's32[]', space=sflag, size = 0x4, offset = 0, fixed_abs, tag = 'sflag constant byte address 0x0 - dummy sync flag']
  #allocation15 [shape = 's32[]', space=sflag, size = 0x4, offset = 0, fixed_abs, tag = 'sflag constant byte address 0x0 - dummy sync flag']
  %s0 = inlined_call_operand.hbm [shape: f32[2], index: 0, kind: input, shape index: {}]
  %s1 = inlined_call_operand.vmem [shape: f32[2], index: 1, kind: input, shape index: {}]
  %s2 = inlined_call_operand.vmem [shape: f32[3], index: 2, kind: input, shape index: {}]
  %s3 = inlined_call_operand.hbm [shape: f32[2,2,32,128], index: 3, kind: input, shape index: {}]
  %s4 = inlined_call_operand.hbm [shape: f32[2,32,128], index: 4, kind: input, shape index: {}]
  %s5 = inlined_call_operand.hbm [shape: f32[2,32,128], index: 5, kind: input, shape index: {}]
  %s6 = inlined_call_operand.hbm [shape: f32[2,2,32,128], index: 6, kind: output, shape index: {}]
  %s7 = sld [smem:[#allocation0]]
  $region57: #{tpu_custom_call.1} parent=0
    _
  %s9 = ssub.s32 1, %s7
  %s10 = scalar_select 0, %s9, %s7
  %12 = dma.hbm_to_smem %s0, 16, [#allocation3], [#allocation2]
  %s13 = sshll.u32 %s1, 4
  %s14 = int_to_ptr.vmem [resolvable:$true] %s13
  %16 = dma.vmem_to_smem %s14, 16, [#allocation4], [#allocation2]
  %s17 = sshll.u32 %s2, 4
  %s18 = int_to_ptr.vmem [resolvable:$true] %s17
  %20 = dma.vmem_to_smem %s18, 16, [#allocation5], [#allocation2]
  %21 = dma.done [#allocation2], 48
  %22 = sfence
  $region1: #{tpu_custom_call.1} parent=0
    #allocation6 [shape = 'u8[65536]{0}', space=vmem, size = 0x10000, scoped, tag = 'input window, operand 3']
    #allocation7 [shape = 's32[2]{0}', space=sflag, size = 0x8, scoped, tag = 'scoped memory for tpu_custom_call.1']
    #allocation8 [shape = 's32[2]{0}', space=sflag, size = 0x8, scoped, tag = 'scoped memory for tpu_custom_call.1']
    #allocation9 [shape = 'u8[32768]{0}', space=vmem, size = 0x8000, scoped, tag = 'input window, operand 4']
    #allocation10 [shape = 's32[2]{0}', space=sflag, size = 0x8, scoped, tag = 'scoped memory for tpu_custom_call.1']
    #allocation11 [shape = 'u8[32768]{0}', space=vmem, size = 0x8000, scoped, tag = 'input window, operand 5']
    #allocation12 [shape = 'u8[65536]{0}', space=vmem, size = 0x10000, scoped, tag = 'output window, operand 0']
    %23 = vsyncpa [#allocation7], 0
    %s24 = scalar_lea.sflag [#allocation7], 1
    %25 = vsyncpa %s24, 0
    %26 = vsyncpa [#allocation10], 0
    %s27 = scalar_lea.sflag [#allocation10], 1
    %28 = vsyncpa %s27, 0
    %29 = vsyncpa [#allocation8], 0
    %s30 = scalar_lea.sflag [#allocation8], 1
    %31 = vsyncpa %s30, 0
    loop: start=0, step=1, limit=4
    $region2: #{tpu_custom_call.1} parent=1 // loop_pre_header
      _
    $region3: #{tpu_custom_call.1} parent=1 // loop_header
      %s33 = sphi 0, %s37
      %p34 = scmp.ge.s32.totalorder %s33, 4
      %s40 = sphi 0, %s52
      %s41 = sphi 0, %s48
      %s42 = sphi 0, %s40
      %s43 = sphi 0, %s41
      %s44 = sphi 0, %s42
      %s45 = sphi 0, %s43
      %s57 = sphi 0, %s59
      %s60 = sphi 0, %s57
      %s61 = sphi 0, %s60
      %s77 = sphi 0, %s61
      %s83 = sphi 0, %s85
      %s86 = sphi 0, %s83
      %s87 = sphi 0, %s86
      %s103 = sphi 0, %s87
      %s109 = sphi 0, %s111
      %s112 = sphi 0, %s109
      %s113 = sphi 0, %s112
      %s129 = sphi 0, %s113
      %s137 = sphi 0, %s139
      %s140 = sphi 0, %s137
      %s141 = sphi 0, %s140
      %s157 = sphi 0, %s141
    $region4: #{tpu_custom_call.1} parent=1 // loop_header_branch
      %36 = sbr.rel (%p34) target = $region8
    $region5: #{tpu_custom_call.1} parent=1 // loop_body
      %s38 = ssub.s32 %s33, 1
      %s39 = ssub.s32 %s33, 2
      %s46 = sadd.s32 1, %s41
      %p47 = scmp.ge.s32.totalorder %s46, 1
      %s48 = scalar_select %p47, 0, %s46
      %s49 = sadd.s32 1, %s40
      %s50 = scalar_select %p47, %s49, %s40
      %p51 = scmp.ge.s32.totalorder %s50, 2
      %s52 = scalar_select %p51, 0, %s50
      %s53 = ssub.s32 %s41, %s48
      %s54 = ssub.s32 %s40, %s52
      %s55 = sor.u32 %s53, %s54
      %p56 = scmp.eq.s32.totalorder %s55, 0
      %s58 = sadd.s32 %s57, 1
      %s59 = scalar_select %p56, %s57, %s58
      %p62 = pneg %p56
      %p63 = scmp.eq.s32.totalorder %s33, 1
      %p64 = por %p62, %p63
      %p65 = scmp.ne.s32.totalorder %s57, %s60
      %p66 = scmp.eq.s32.totalorder %s33, 0
      %p67 = por %p65, %p66
      %p68 = scmp.ne.s32.totalorder %s57, %s60
      %p69 = scmp.eq.s32.totalorder %s38, 1
      %p70 = por %p68, %p69
      %p71 = scmp.ne.s32.totalorder %s60, %s61
      %p72 = scmp.eq.s32.totalorder %s38, 0
      %p73 = por %p71, %p72
      %p74 = scmp.ne.s32.totalorder %s60, %s61
      %p75 = scmp.eq.s32.totalorder %s39, 1
      %p76 = por %p74, %p75
      %p78 = scmp.ne.s32.totalorder %s61, %s77
      %p79 = scmp.eq.s32.totalorder %s39, 0
      %p80 = por %p78, %p79
      %s81 = ssub.s32 %s40, %s52
      %p82 = scmp.eq.s32.totalorder %s81, 0
      %s84 = sadd.s32 %s83, 1
      %s85 = scalar_select %p82, %s83, %s84
      %p88 = pneg %p82
      %p89 = scmp.eq.s32.totalorder %s33, 1
      %p90 = por %p88, %p89
      %p91 = scmp.ne.s32.totalorder %s83, %s86
      %p92 = scmp.eq.s32.totalorder %s33, 0
      %p93 = por %p91, %p92
      %p94 = scmp.ne.s32.totalorder %s83, %s86
      %p95 = scmp.eq.s32.totalorder %s38, 1
      %p96 = por %p94, %p95
      %p97 = scmp.ne.s32.totalorder %s86, %s87
      %p98 = scmp.eq.s32.totalorder %s38, 0
      %p99 = por %p97, %p98
      %p100 = scmp.ne.s32.totalorder %s86, %s87
      %p101 = scmp.eq.s32.totalorder %s39, 1
      %p102 = por %p100, %p101
      %p104 = scmp.ne.s32.totalorder %s87, %s103
      %p105 = scmp.eq.s32.totalorder %s39, 0
      %p106 = por %p104, %p105
      %s107 = ssub.s32 %s40, %s52
      %p108 = scmp.eq.s32.totalorder %s107, 0
      %s110 = sadd.s32 %s109, 1
      %s111 = scalar_select %p108, %s109, %s110
      %p114 = pneg %p108
      %p115 = scmp.eq.s32.totalorder %s33, 1
      %p116 = por %p114, %p115
      %p117 = scmp.ne.s32.totalorder %s109, %s112
      %p118 = scmp.eq.s32.totalorder %s33, 0
      %p119 = por %p117, %p118
      %p120 = scmp.ne.s32.totalorder %s109, %s112
      %p121 = scmp.eq.s32.totalorder %s38, 1
      %p122 = por %p120, %p121
      %p123 = scmp.ne.s32.totalorder %s112, %s113
      %p124 = scmp.eq.s32.totalorder %s38, 0
      %p125 = por %p123, %p124
      %p126 = scmp.ne.s32.totalorder %s112, %s113
      %p127 = scmp.eq.s32.totalorder %s39, 1
      %p128 = por %p126, %p127
      %p130 = scmp.ne.s32.totalorder %s113, %s129
      %p131 = scmp.eq.s32.totalorder %s39, 0
      %p132 = por %p130, %p131
      %s133 = ssub.s32 %s41, %s48
      %s134 = ssub.s32 %s40, %s52
      %s135 = sor.u32 %s133, %s134
      %p136 = scmp.eq.s32.totalorder %s135, 0
      %s138 = sadd.s32 %s137, 1
      %s139 = scalar_select %p136, %s137, %s138
      %p142 = pneg %p136
      %p143 = scmp.eq.s32.totalorder %s33, 1
      %p144 = por %p142, %p143
      %p145 = scmp.ne.s32.totalorder %s137, %s140
      %p146 = scmp.eq.s32.totalorder %s33, 0
      %p147 = por %p145, %p146
      %p148 = scmp.ne.s32.totalorder %s137, %s140
      %p149 = scmp.eq.s32.totalorder %s38, 1
      %p150 = por %p148, %p149
      %p151 = scmp.ne.s32.totalorder %s140, %s141
      %p152 = scmp.eq.s32.totalorder %s38, 0
      %p153 = por %p151, %p152
      %p154 = scmp.ne.s32.totalorder %s140, %s141
      %p155 = scmp.eq.s32.totalorder %s39, 1
      %p156 = por %p154, %p155
      %p158 = scmp.ne.s32.totalorder %s141, %s157
      %p159 = scmp.eq.s32.totalorder %s39, 0
      %p160 = por %p158, %p159
      %p161 = scmp.le.s32.totalorder 1, %s33
      %p162 = scmp.lt.s32.totalorder %s33, 3
      %p163 = pnand %p161, %p162
      %p164 = pneg %p163
      // Predicated region
      $region9: #{tpu_custom_call.1} parent=5 // pred_check
        _
      $region10: #{tpu_custom_call.1} parent=5 // pred_check_branch
        %166 = sbr.rel (%p163) target = $region12
      $region11: #{tpu_custom_call.1} parent=5 // pred_region
        %s167 = ssub.s32 %s33, 1
      $region12: #{tpu_custom_call.1} parent=5 // pred_fallthru
        _
      %p168 = scmp.lt.s32.totalorder %s33, 2
      // Predicated region
      $region13: #{tpu_custom_call.1} parent=5 // pred_check
        %p169 = pneg %p168
      $region14: #{tpu_custom_call.1} parent=5 // pred_check_branch
        %171 = sbr.rel (%p169) target = $region16
      $region15: #{tpu_custom_call.1} parent=5 // pred_region
        // Predicated region
        $region17: #{tpu_custom_call.1} parent=15 // pred_check
          %p172 = pneg %p67
        $region18: #{tpu_custom_call.1} parent=15 // pred_check_branch
          %174 = sbr.rel (%p172) target = $region20
        $region19: #{tpu_custom_call.1} parent=15 // pred_region
          #allocation14 [shape = 'u32[6]{0}', space=smem, size = 0x18, scoped, tag = 'DMA stride descriptor']
          %s175 = sand.u32 %s57, 1
          %s176 = scalar_lea.sflag [#allocation7], %s175
          %s177 = sand.u32 %s57, 1
          %s178 = smul.addr %s177, 64
          %s179 = scalar_lea.vmem [#allocation6], %s178
          %s180 = smul.u32 2, %s41
          %s182 = ssub.s32 1024, 1024
          %183 = vsyncadd %s176, %s182
          %s184 = smul.addr %s40, 4
          %s185 = smul.addr %s180, 8
          %s186 = sadd.s32 %s184, %s185
          %s187 = smul.addr %s186, 128
          %s188 = scalar_lea.hbm %s3, %s187
          %s190 = sshll.u32 1, 14
          %s191 = sxor.u32 4294967295, %s190
          %s193 = sld [smem:[#allocation0]]
          %s194 = sadd.s32 2, %s193
          %s196 = sshll.u32 7, 26
          %s197 = sxor.u32 4294967295, %s196
          %s198 = sand.u32 0, %s197
          %s199 = sshll.u32 %s194, 26
          %s200 = sor.u32 %s198, %s199
          %s201 = sshll.u32 %s179, 4
          %s202 = int_to_ptr.vmem [resolvable:$true] %s201
          %208 = sst [smem:[#allocation14]] 1024
          %s209 = scalar_lea.smem [#allocation14], 1
          %210 = sst [smem:[%s209]] 512
          %s211 = scalar_lea.smem [#allocation14], 2
          %212 = sst [smem:[%s211]] 4
          %s213 = scalar_lea.smem [#allocation14], 3
          %214 = sst [smem:[%s213]] 128
          %s215 = scalar_lea.smem [#allocation14], 4
          %216 = sst [smem:[%s215]] 128
          %s217 = scalar_lea.smem [#allocation14], 5
          %218 = sst [smem:[%s217]] 8
          %220 = dma.general %s188, 1024, %s202, %s176, [#allocation13], [#allocation14], %s200, 0
        $region20: #{tpu_custom_call.1} parent=15 // pred_fallthru
          _
        // Predicated region
        $region21: #{tpu_custom_call.1} parent=15 // pred_check
          %p221 = pneg %p93
        $region22: #{tpu_custom_call.1} parent=15 // pred_check_branch
          %223 = sbr.rel (%p221) target = $region24
        $region23: #{tpu_custom_call.1} parent=15 // pred_region
          %s224 = sand.u32 %s33, 1
          %s225 = scalar_lea.sflag [#allocation10], %s224
          %s226 = sand.u32 %s83, 1
          %s227 = smul.addr %s226, 32
          %s228 = scalar_lea.vmem [#allocation9], %s227
          %s230 = ssub.s32 512, 512
          %231 = vsyncadd %s225, %s230
          %s232 = smul.addr %s40, 4
          %s233 = smul.addr %s232, 128
          %s234 = scalar_lea.hbm %s4, %s233
          %s235 = sshll.u32 %s228, 4
          %s236 = int_to_ptr.vmem [resolvable:$true] %s235
          %241 = dma.hbm_to_vmem [thread:$0]  %s234, 512, %s236, %s225, 128, 128, 8
        $region24: #{tpu_custom_call.1} parent=15 // pred_fallthru
          _
        // Predicated region
        $region25: #{tpu_custom_call.1} parent=15 // pred_check
          %p242 = pneg %p119
        $region26: #{tpu_custom_call.1} parent=15 // pred_check_branch
          %244 = sbr.rel (%p242) target = $region28
        $region27: #{tpu_custom_call.1} parent=15 // pred_region
          %s245 = sand.u32 %s33, 1
          %s246 = scalar_lea.sflag [#allocation10], %s245
          %s247 = sand.u32 %s109, 1
          %s248 = smul.addr %s247, 32
          %s249 = scalar_lea.vmem [#allocation11], %s248
          %s251 = ssub.s32 512, 512
          %252 = vsyncadd %s246, %s251
          %s253 = smul.addr %s40, 4
          %s254 = smul.addr %s253, 128
          %s255 = scalar_lea.hbm %s5, %s254
          %s256 = sshll.u32 %s249, 4
          %s257 = int_to_ptr.vmem [resolvable:$true] %s256
          %262 = dma.hbm_to_vmem [thread:$0]  %s255, 512, %s257, %s246, 128, 128, 8
        $region28: #{tpu_custom_call.1} parent=15 // pred_fallthru
          _
      $region16: #{tpu_custom_call.1} parent=5 // pred_fallthru
        _
      %p263 = scmp.le.s32.totalorder 1, %s33
      %p264 = scmp.lt.s32.totalorder %s33, 3
      %p265 = pnand %p263, %p264
      %p266 = pneg %p265
      // Predicated region
      $region29: #{tpu_custom_call.1} parent=5 // pred_check
        _
      $region30: #{tpu_custom_call.1} parent=5 // pred_check_branch
        %268 = sbr.rel (%p265) target = $region32
      $region31: #{tpu_custom_call.1} parent=5 // pred_region
        %s269 = ssub.s32 %s33, 1
        %s270 = sand.u32 %s60, 1
        %s271 = scalar_lea.sflag [#allocation7], %s270
        %s272 = sand.u32 %s60, 1
        %s273 = smul.addr %s272, 64
        %s274 = scalar_lea.vmem [#allocation6], %s273
        // Predicated region
        $region33: #{tpu_custom_call.1} parent=31 // pred_check
          %p275 = pneg %p73
        $region34: #{tpu_custom_call.1} parent=31 // pred_check_branch
          %277 = sbr.rel (%p275) target = $region36
        $region35: #{tpu_custom_call.1} parent=31 // pred_region
          %278 = dma.done %s271, 1024
        $region36: #{tpu_custom_call.1} parent=31 // pred_fallthru
          _
        %s279 = sand.u32 %s38, 1
        %s280 = scalar_lea.sflag [#allocation10], %s279
        %s281 = sand.u32 %s86, 1
        %s282 = smul.addr %s281, 32
        %s283 = scalar_lea.vmem [#allocation9], %s282
        // Predicated region
        $region37: #{tpu_custom_call.1} parent=31 // pred_check
          %p284 = pneg %p99
        $region38: #{tpu_custom_call.1} parent=31 // pred_check_branch
          %286 = sbr.rel (%p284) target = $region40
        $region39: #{tpu_custom_call.1} parent=31 // pred_region
          %287 = dma.done %s280, 512
        $region40: #{tpu_custom_call.1} parent=31 // pred_fallthru
          _
        %s288 = sand.u32 %s38, 1
        %s289 = scalar_lea.sflag [#allocation10], %s288
        %s290 = sand.u32 %s112, 1
        %s291 = smul.addr %s290, 32
        %s292 = scalar_lea.vmem [#allocation11], %s291
        // Predicated region
        $region41: #{tpu_custom_call.1} parent=31 // pred_check
          %p293 = pneg %p125
        $region42: #{tpu_custom_call.1} parent=31 // pred_check_branch
          %295 = sbr.rel (%p293) target = $region44
        $region43: #{tpu_custom_call.1} parent=31 // pred_region
          %296 = dma.done %s289, 512
        $region44: #{tpu_custom_call.1} parent=31 // pred_fallthru
          _
        %s297 = sand.u32 %s60, 1
        %s298 = scalar_lea.sflag [#allocation7], %s297
        %s299 = sand.u32 %s60, 1
        %s300 = smul.addr %s299, 64
        %s301 = scalar_lea.vmem [#allocation6], %s300
        %p302 = pneg %p73
        %p303 = pneg %p70
        %s304 = sand.u32 %s38, 1
        %s305 = scalar_lea.sflag [#allocation10], %s304
        %s306 = sand.u32 %s86, 1
        %s307 = smul.addr %s306, 32
        %s308 = scalar_lea.vmem [#allocation9], %s307
        %p309 = pneg %p99
        %p310 = pneg %p96
        %s311 = sand.u32 %s38, 1
        %s312 = scalar_lea.sflag [#allocation10], %s311
        %s313 = sand.u32 %s112, 1
        %s314 = smul.addr %s313, 32
        %s315 = scalar_lea.vmem [#allocation11], %s314
        %p316 = pneg %p125
        %p317 = pneg %p122
        %p318 = pneg %p153
        %p319 = pneg %p150
        %s320 = sand.u32 %s140, 1
        %s321 = scalar_lea.sflag [#allocation8], %s320
        %s322 = sand.u32 %s140, 1
        %s323 = smul.addr %s322, 64
        %s324 = scalar_lea.vmem [#allocation12], %s323
        %s325 = smul.u32 2, %s43
        %s326 = smul.u32 2, %s43
        %v327 = vld [vmem:[%s274] sm:$0xff]
        %v328 = vld [vmem:[%s274 + $0x8] sm:$0xff]
        %v329 = vld [vmem:[%s274 + $0x10] sm:$0xff]
        %v330 = vld [vmem:[%s274 + $0x18] sm:$0xff]
        %v331 = vld [vmem:[%s274 + $0x20] sm:$0xff]
        %v332 = vld [vmem:[%s274 + $0x28] sm:$0xff]
        %v333 = vld [vmem:[%s274 + $0x30] sm:$0xff]
        %v334 = vld [vmem:[%s274 + $0x38] sm:$0xff]
        %v335 = vadd.f32 %v327, %v328
        %v336 = vadd.f32 %v335, %v329
        %v337 = vadd.f32 %v336, %v330
        %338 = vadd.xlane.f32.xlu0 %v337
        %v339 = vpop.xlane.xlu0 %338
        %v340 = vrot.slane %v339, 4
        %v341 = vadd.f32 %v339, %v340
        %v342 = vrot.slane %v341, 2
        %v343 = vadd.f32 %v341, %v342
        %v344 = vrot.slane %v343, 1
        %v345 = vadd.f32 %v343, %v344
        %v346 = vadd.f32 %v331, %v332
        %v347 = vadd.f32 %v346, %v333
        %v348 = vadd.f32 %v347, %v334
        %349 = vadd.xlane.f32.xlu0 %v348
        %v350 = vpop.xlane.xlu0 %349
        %v351 = vrot.slane %v350, 4
        %v352 = vadd.f32 %v350, %v351
        %v353 = vrot.slane %v352, 2
        %v354 = vadd.f32 %v352, %v353
        %v355 = vrot.slane %v354, 1
        %v356 = vadd.f32 %v354, %v355
        %v357 = vmul.f32 %v345, 0.00024414063
        %v358 = vmul.f32 %v356, 0.00024414063
        %v359 = vmul.f32 %v327, %v327
        %v360 = vmul.f32 %v328, %v328
        %v361 = vmul.f32 %v329, %v329
        %v362 = vmul.f32 %v330, %v330
        %v363 = vmul.f32 %v331, %v331
        %v364 = vmul.f32 %v332, %v332
        %v365 = vmul.f32 %v333, %v333
        %v366 = vmul.f32 %v334, %v334
        %v367 = vadd.f32 %v359, %v360
        %v368 = vadd.f32 %v367, %v361
        %v369 = vadd.f32 %v368, %v362
        %370 = vadd.xlane.f32.xlu0 %v369
        %v371 = vpop.xlane.xlu0 %370
        %v372 = vrot.slane %v371, 4
        %v373 = vadd.f32 %v371, %v372
        %v374 = vrot.slane %v373, 2
        %v375 = vadd.f32 %v373, %v374
        %v376 = vrot.slane %v375, 1
        %v377 = vadd.f32 %v375, %v376
        %v378 = vadd.f32 %v363, %v364
        %v379 = vadd.f32 %v378, %v365
        %v380 = vadd.f32 %v379, %v366
        %381 = vadd.xlane.f32.xlu0 %v380
        %v382 = vpop.xlane.xlu0 %381
        %v383 = vrot.slane %v382, 4
        %v384 = vadd.f32 %v382, %v383
        %v385 = vrot.slane %v384, 2
        %v386 = vadd.f32 %v384, %v385
        %v387 = vrot.slane %v386, 1
        %v388 = vadd.f32 %v386, %v387
        %v389 = vmul.f32 %v377, 0.00024414063
        %v390 = vmul.f32 %v388, 0.00024414063
        %v391 = vmul.f32 %v357, %v357
        %v392 = vmul.f32 %v358, %v358
        %v393 = vsub.f32 %v389, %v391
        %v394 = vsub.f32 %v390, %v392
        %s395 = sld [smem:[#allocation3 + %s42]]
        %s396 = sld [smem:[#allocation4 + %s42]]
        %s397 = sld [smem:[#allocation5]]
        %s398 = sld [smem:[#allocation5 + $0x1]]
        %s399 = sld [smem:[#allocation5 + $0x2]]
        %v400 = vstv %s395
        %v401 = vmul.f32 %v393, %v400
        %v402 = vmul.f32 %v394, %v400
        %v403 = vstv %s398
        %v404 = vsub.f32 %v401, %v403
        %v405 = vsub.f32 %v402, %v403
        %v406 = vmul.f32 %v404, %v404
        %v407 = vmul.f32 %v405, %v405
        %v408 = vstv %s397
        %v409 = vmul.f32 %v408, %v406
        %v410 = vmul.f32 %v408, %v407
        %v411 = vstv %s399
        %v412 = vadd.f32 %v409, %v411
        %v413 = vadd.f32 %v410, %v411
        %v414 = vstv %s396
        %v415 = vmul.f32 %v412, %v414
        %v416 = vmul.f32 %v413, %v414
        %v417 = vsub.f32 %v327, %v357
        %v418 = vsub.f32 %v328, %v357
        %v419 = vsub.f32 %v329, %v357
        %v420 = vsub.f32 %v330, %v357
        %v421 = vsub.f32 %v331, %v358
        %v422 = vsub.f32 %v332, %v358
        %v423 = vsub.f32 %v333, %v358
        %v424 = vsub.f32 %v334, %v358
        %v425 = vmul.f32 %v417, %v415
        %v426 = vmul.f32 %v418, %v415
        %v427 = vmul.f32 %v419, %v415
        %v428 = vmul.f32 %v420, %v415
        %v429 = vmul.f32 %v421, %v416
        %v430 = vmul.f32 %v422, %v416
        %v431 = vmul.f32 %v423, %v416
        %v432 = vmul.f32 %v424, %v416
        %v433 = vld [vmem:[%s283] sm:$0xff]
        %v434 = vld [vmem:[%s283 + $0x8] sm:$0xff]
        %v435 = vld [vmem:[%s283 + $0x10] sm:$0xff]
        %v436 = vld [vmem:[%s283 + $0x18] sm:$0xff]
        %v437 = vld [vmem:[%s292] sm:$0xff]
        %v438 = vld [vmem:[%s292 + $0x8] sm:$0xff]
        %v439 = vld [vmem:[%s292 + $0x10] sm:$0xff]
        %v440 = vld [vmem:[%s292 + $0x18] sm:$0xff]
        %v441 = vmul.f32 %v433, %v425
        %v442 = vmul.f32 %v434, %v426
        %v443 = vmul.f32 %v435, %v427
        %v444 = vmul.f32 %v436, %v428
        %v445 = vmul.f32 %v433, %v429
        %v446 = vmul.f32 %v434, %v430
        %v447 = vmul.f32 %v435, %v431
        %v448 = vmul.f32 %v436, %v432
        %v449 = vadd.f32 %v441, %v437
        %v450 = vadd.f32 %v442, %v438
        %v451 = vadd.f32 %v443, %v439
        %v452 = vadd.f32 %v444, %v440
        %v453 = vadd.f32 %v445, %v437
        %v454 = vadd.f32 %v446, %v438
        %v455 = vadd.f32 %v447, %v439
        %v456 = vadd.f32 %v448, %v440
        %457 = vst [vmem:[%s324] sm:$0xff] %v449
        %458 = vst [vmem:[%s324 + $0x8] sm:$0xff] %v450
        %459 = vst [vmem:[%s324 + $0x10] sm:$0xff] %v451
        %460 = vst [vmem:[%s324 + $0x18] sm:$0xff] %v452
        %461 = vst [vmem:[%s324 + $0x20] sm:$0xff] %v453
        %462 = vst [vmem:[%s324 + $0x28] sm:$0xff] %v454
        %463 = vst [vmem:[%s324 + $0x30] sm:$0xff] %v455
        %464 = vst [vmem:[%s324 + $0x38] sm:$0xff] %v456
        %s465 = sand.u32 %s140, 1
        %s466 = scalar_lea.sflag [#allocation8], %s465
        %s467 = sand.u32 %s140, 1
        %s468 = smul.addr %s467, 64
        %s469 = scalar_lea.vmem [#allocation12], %s468
        // Predicated region
        $region45: #{tpu_custom_call.1} parent=31 // pred_check
          %p470 = pneg %p150
        $region46: #{tpu_custom_call.1} parent=31 // pred_check_branch
          %472 = sbr.rel (%p470) target = $region48
        $region47: #{tpu_custom_call.1} parent=31 // pred_region
          #allocation16 [shape = 'u32[6]{0}', space=smem, size = 0x18, scoped, tag = 'DMA stride descriptor']
          %s473 = smul.u32 2, %s43
          %s475 = ssub.s32 1024, 1024
          %476 = vsyncadd %s466, %s475
          %s477 = smul.addr %s42, 4
          %s478 = smul.addr %s473, 8
          %s479 = sadd.s32 %s477, %s478
          %s480 = smul.addr %s479, 128
          %s481 = scalar_lea.hbm %s6, %s480
          %s483 = sshll.u32 1, 14
          %s484 = sxor.u32 4294967295, %s483
          %s487 = sshll.u32 7, 18
          %s488 = sxor.u32 4294967295, %s487
          %s489 = sand.u32 0, %s488
          %s491 = sor.u32 %s489, 0
          %s493 = sshll.u32 3, 24
          %s494 = sxor.u32 4294967295, %s493
          %s495 = sand.u32 %s491, %s494
          %s497 = sor.u32 %s495, 0
          %s498 = sshll.u32 %s469, 4
          %s499 = int_to_ptr.vmem [resolvable:$true] %s498
          %505 = sst [smem:[#allocation16]] 512
          %s506 = scalar_lea.smem [#allocation16], 1
          %507 = sst [smem:[%s506]] 1024
          %s508 = scalar_lea.smem [#allocation16], 2
          %509 = sst [smem:[%s508]] 4
          %s510 = scalar_lea.smem [#allocation16], 3
          %511 = sst [smem:[%s510]] 128
          %s512 = scalar_lea.smem [#allocation16], 4
          %513 = sst [smem:[%s512]] 128
          %s514 = scalar_lea.smem [#allocation16], 5
          %515 = sst [smem:[%s514]] 8
          %517 = dma.general %s499, 1024, %s481, %s466, [#allocation15], [#allocation16], %s497, 0
        $region48: #{tpu_custom_call.1} parent=31 // pred_fallthru
          _
      $region32: #{tpu_custom_call.1} parent=5 // pred_fallthru
        _
      %p518 = scmp.le.s32.totalorder 2, %s33
      // Predicated region
      $region49: #{tpu_custom_call.1} parent=5 // pred_check
        %p519 = pneg %p518
      $region50: #{tpu_custom_call.1} parent=5 // pred_check_branch
        %521 = sbr.rel (%p519) target = $region52
      $region51: #{tpu_custom_call.1} parent=5 // pred_region
        %s522 = ssub.s32 %s33, 2
        // Predicated region
        $region53: #{tpu_custom_call.1} parent=51 // pred_check
          %p523 = pneg %p156
        $region54: #{tpu_custom_call.1} parent=51 // pred_check_branch
          %525 = sbr.rel (%p523) target = $region56
        $region55: #{tpu_custom_call.1} parent=51 // pred_region
          %s526 = sand.u32 %s141, 1
          %s527 = scalar_lea.sflag [#allocation8], %s526
          %s528 = sand.u32 %s141, 1
          %s529 = smul.addr %s528, 64
          %s530 = scalar_lea.vmem [#allocation12], %s529
          %531 = dma.done %s527, 1024
        $region56: #{tpu_custom_call.1} parent=51 // pred_fallthru
          _
      $region52: #{tpu_custom_call.1} parent=5 // pred_fallthru
        _
    $region6: #{tpu_custom_call.1} parent=1 // loop_footer
      %s37 = sadd.s32 1, %s33
    $region7: #{tpu_custom_call.1} parent=1 // loop_footer_branch
      %32 = sbr.rel target = $region3
    $region8: #{tpu_custom_call.1} parent=1 // loop_exit
      _
    %532 = vsyncpa [#allocation7], 1
    %s533 = scalar_lea.sflag [#allocation7], 1
    %534 = vsyncpa %s533, 1
    %535 = vsyncpa [#allocation10], 1
    %s536 = scalar_lea.sflag [#allocation10], 1
    %537 = vsyncpa %s536, 1
    %538 = vsyncpa [#allocation8], 1
    %s539 = scalar_lea.sflag [#allocation8], 1
    %540 = vsyncpa %s539, 1

</llo_original>
